<compile_context>
chip_gen: v7x
topology: tpu7x:2x2x1
jax: 0.10.0
libtpu: 0.0.40
codegen_flags: <defaults>
</compile_context>

<pallas_src>
import math
import functools

import jax
import jax.numpy as jnp
from jax.experimental import pallas as pl
from jax.experimental.pallas import tpu as pltpu


def build_pe_table(d_model: int, max_len: int = 1000) -> jnp.ndarray:
    """Deterministic sinusoidal positional-encoding table, shape (max_len, d_model)."""
    position = jnp.arange(max_len, dtype=jnp.float32)[:, None]                  # (L, 1)
    div_term = jnp.exp(jnp.arange(0, d_model, 2, dtype=jnp.float32)
                       * (-math.log(10000.0) / d_model))                         # (D/2,)
    pe = jnp.zeros((max_len, d_model), dtype=jnp.float32)
    pe = pe.at[:, 0::2].set(jnp.sin(position * div_term))
    pe = pe.at[:, 1::2].set(jnp.cos(position * div_term))
    return pe


def _cdiv(a: int, b: int) -> int:
    return -(-a // b)


def _round_up(a: int, m: int) -> int:
    return _cdiv(a, m) * m


def _plan_tiling(B: int, total: int, itemsize: int):
    """Pick (lane_tile, steps, padded_total) for the (B, total) flattened arrays.

    Accounts for sublane padding, all three operands and double buffering so the real
    pipelined VMEM usage stays under budget on v5e/v6e/v7x.
    """
    # Sublane padding of a VMEM tile: 8 rows for 32-bit dtypes, 16 for 16-bit, 32 for 8-bit.
    sub = 8 * max(1, 4 // itemsize)
    rows_x = _round_up(max(B, 1), sub)     # padded rows of each (B, tn) x / out tile
    rows_pe = sub                          # the (1, tn) PE tile still pads to `sub` rows
    # Double-buffered pipeline over x, out (rows_x each) and pe (rows_pe): 2 buffers each.
    bytes_per_lane = 2 * (2 * rows_x + rows_pe) * itemsize
    budget = 24 * 1024 * 1024              # total pipelined VMEM budget (fits every gen)
    max_tn = max(128, (budget // bytes_per_lane) // 128 * 128)
    tn = min(max_tn, 2048)                 # >=512-lane tiles already reach ~85% HBM roofline

    steps = max(1, _cdiv(total, tn))
    if total >= 256:
        steps = max(steps, 2)              # give both v7x TensorCores work
    if steps == 2 and _cdiv(total, 4) >= 512:
        steps = 4                          # finer megacore balance while tiles stay >=512
    if steps > 1 and steps % 2:
        steps += 1                         # even step count => balanced megacore split
    tn = min(tn, _round_up(_cdiv(total, steps), 128))
    padded_total = steps * tn
    return tn, steps, padded_total


def _make_kernel(dropout_p: float, training: bool, tn: int, padded_total: int):
    apply_dropout = training and dropout_p > 0.0
    thresh_int = min(int(round(dropout_p * (1 << 32))), (1 << 32) - 1)
    inv_keep = 1.0 / (1.0 - dropout_p) if dropout_p < 1.0 else 0.0

    def kernel(seed_ref, x_ref, pe_ref, o_ref):
        # x_ref: (B, tn) VMEM tile; pe_ref: (1, tn) tile of the PE window (row broadcast).
        y = x_ref[...] + pe_ref[...]
        if apply_dropout:
            # Counter-based hash RNG: deterministic per (seed, global element index),
            # pure VPU integer ops (no pltpu.prng_* -> also works in interpret mode).
            row = jax.lax.broadcasted_iota(jnp.int32, y.shape, 0).astype(jnp.uint32)
            col = jax.lax.broadcasted_iota(jnp.int32, y.shape, 1).astype(jnp.uint32)
            tile_off = pl.program_id(0).astype(jnp.uint32) * jnp.uint32(tn)
            idx = row * jnp.uint32(padded_total) + tile_off + col
            h = idx ^ (seed_ref[0].astype(jnp.uint32) * jnp.uint32(0x9E3779B9))
            h = (h ^ (h >> 16)) * jnp.uint32(0x7FEB352D)      # splitmix32-style mix
            h = (h ^ (h >> 15)) * jnp.uint32(0x846CA68B)
            h = h ^ (h >> 16)
            keep = h >= jnp.uint32(thresh_int)                # P(keep) = 1 - dropout_p
            y = jnp.where(keep, y * inv_keep, 0.0)            # scale folded into select
        o_ref[...] = y.astype(o_ref.dtype)

    return kernel


@functools.partial(jax.jit, static_argnames=("dropout_p", "training"))
def positional_encoding_fwd(x, pe, position_counter, seed,
                            dropout_p: float = 0.0, training: bool = False):
    """x: (B, S, D), pe: (L, D), position_counter/seed: int32 scalars."""
    B, S, D = x.shape
    total = S * D
    itemsize = jnp.dtype(x.dtype).itemsize

    # Slice the PE window in the wrapper.  dynamic_slice clamps the start index, so
    # position_counter must satisfy 0 <= position_counter <= L - S for exact PyTorch parity.
    pos = jnp.asarray(position_counter, jnp.int32)
    pe_win = jax.lax.dynamic_slice(pe, (pos, jnp.int32(0)), (S, D)).astype(x.dtype)

    # Lane-dense flattening: (B, S, D) -> (B, S*D); PE window -> (1, S*D).
    x2 = x.reshape(B, total)
    pe2 = pe_win.reshape(1, total)

    tn, steps, padded_total = _plan_tiling(B, total, itemsize)
    pad = padded_total - total
    if pad:
        x2 = jnp.pad(x2, ((0, 0), (0, pad)))
        pe2 = jnp.pad(pe2, ((0, 0), (0, pad)))

    seed_arr = jnp.asarray([seed], jnp.int32)
    kernel = _make_kernel(dropout_p, training, tn, padded_total)

    cost = pl.CostEstimate(
        flops=2 * B * padded_total,
        transcendentals=0,
        bytes_accessed=(2 * B + 1) * padded_total * itemsize,
    )

    out2 = pl.pallas_call(
        kernel,
        out_shape=jax.ShapeDtypeStruct((B, padded_total), x.dtype),
        grid_spec=pltpu.PrefetchScalarGridSpec(
            num_scalar_prefetch=1,
            grid=(steps,),
            in_specs=[
                pl.BlockSpec((B, tn), lambda j, seed_ref: (0, j)),
                pl.BlockSpec((1, tn), lambda j, seed_ref: (0, j)),
            ],
            out_specs=pl.BlockSpec((B, tn), lambda j, seed_ref: (0, j)),
        ),
        compiler_params=pltpu.CompilerParams(
            dimension_semantics=("parallel",),
            vmem_limit_bytes=32 * 1024 * 1024,
        ),
        input_output_aliases={1: 0},      # operand 1 = x2 (operand 0 is the prefetched seed)
        cost_estimate=cost,
    )(seed_arr, x2, pe2)

    return out2[:, :total].reshape(B, S, D)


if __name__ == "__main__":
    # Small shapes consistent with the module: batch=2, seq=8, d_model=32.
    B, S, D = 2, 8, 32
    MAX_LEN = 1000
    position_counter = 3
    dropout_p = 0.1

    key = jax.random.PRNGKey(0)
    x = jax.random.normal(key, (B, S, D), dtype=jnp.float32)
    pe = build_pe_table(D, MAX_LEN)

    # Eval mode: dropout is identity.
    out = positional_encoding_fwd(x, pe, position_counter, 0,
                                  dropout_p=dropout_p, training=False)
    out = jax.block_until_ready(out)

    ref = x + pe[position_counter:position_counter + S, :][None, :, :]
    assert out.shape == (B, S, D) and out.dtype == jnp.float32
    assert jnp.allclose(out, ref, atol=1e-6, rtol=1e-6)

    # Training mode: inverted dropout; kept elements must equal (x + pe) / (1 - p).
    out_tr = positional_encoding_fwd(x, pe, position_counter, 123,
                                     dropout_p=dropout_p, training=True)
    out_tr = jax.block_until_ready(out_tr)
    assert out_tr.shape == (B, S, D)
    assert bool(jnp.all(jnp.isfinite(out_tr)))
    scaled_ref = ref / (1.0 - dropout_p)
    kept = out_tr != 0
    assert bool(jnp.all(jnp.where(kept, jnp.abs(out_tr - scaled_ref), 0.0) < 1e-4))

    # TODO(synk): training-mode dropout uses a counter-based hash RNG (deterministic per
    # seed + element index + tiling), not bit-identical to torch.nn.Dropout's RNG stream.

    print("KERNEL_OK")
</pallas_src>

<mosaic_0001>
module attributes {stable_mosaic.version = 11 : i64} {
  func.func @kernel(%arg0: i32, %arg1: memref<1xi32, #tpu.memory_space<smem>>, %arg2: memref<2x128xf32, #tpu.memory_space<vmem>>, %arg3: memref<1x128xf32, #tpu.memory_space<vmem>>, %arg4: memref<2x128xf32, #tpu.memory_space<vmem>>) attributes {dimension_semantics = [#tpu.dimension_semantics<parallel>], iteration_bounds = array<i64: 2>, scalar_prefetch = 1 : i64, scratch_operands = 0 : i64, tpu.core_type = #tpu.core_type<tc>, window_params = [{transform_indices = @transform_0, window_bounds = array<i64: 2, 128>}, {transform_indices = @transform_1, window_bounds = array<i64: 1, 128>}, {transform_indices = @transform_2, window_bounds = array<i64: 2, 128>}]} {
    %c0 = arith.constant 0 : index
    %c0_0 = arith.constant 0 : index
    %0 = vector.load %arg2[%c0, %c0_0] : memref<2x128xf32, #tpu.memory_space<vmem>>, vector<2x128xf32>
    %c0_1 = arith.constant 0 : index
    %c0_2 = arith.constant 0 : index
    %1 = vector.load %arg3[%c0_1, %c0_2] : memref<1x128xf32, #tpu.memory_space<vmem>>, vector<1x128xf32>
    %2 = vector.broadcast %1 : vector<1x128xf32> to vector<2x128xf32>
    %3 = arith.addf %0, %2 : vector<2x128xf32>
    %c0_3 = arith.constant 0 : index
    %c0_4 = arith.constant 0 : index
    %4 = vector.load %arg4[%c0_3, %c0_4] : memref<2x128xf32, #tpu.memory_space<vmem>>, vector<2x128xf32>
    tpu.vector_store %arg4[%c0_3, %c0_4], %3 {strides = array<i32>} : memref<2x128xf32, #tpu.memory_space<vmem>>, vector<2x128xf32>,
    return
  }
  func.func @transform_0(%arg0: i32, %arg1: memref<1xi32, #tpu.memory_space<smem>>) -> (i32, i32) {
    %c0_i32 = arith.constant 0 : i32
    %c0_i32_0 = arith.constant 0 : i32
    return %c0_i32, %arg0 : i32, i32
  }
  func.func @transform_1(%arg0: i32, %arg1: memref<1xi32, #tpu.memory_space<smem>>) -> (i32, i32) {
    %c0_i32 = arith.constant 0 : i32
    %c0_i32_0 = arith.constant 0 : i32
    return %c0_i32, %arg0 : i32, i32
  }
  func.func @transform_2(%arg0: i32, %arg1: memref<1xi32, #tpu.memory_space<smem>>) -> (i32, i32) {
    %c0_i32 = arith.constant 0 : i32
    %c0_i32_0 = arith.constant 0 : i32
    return %c0_i32, %arg0 : i32, i32
  }
}

</mosaic_0001>

<llo_original>
// kernel: positional_encoding_fwd.1
$region0: #{positional_encoding_fwd.1}
  #allocation0 [shape = 'u32[]', space=smem, size = 0x4, offset = 0x4, fixed_abs, tag = 'smem constant byte address 0x4 - core index']
  #allocation1 [shape = 'u32[144,128]{1,0:T(1,128)}', space=vmem, size = 0x12000, scoped, tag = 'internal scratch']
  #allocation2 [shape = 's32[1]{0}', space=sflag, size = 0x4, scoped, tag = 'scoped memory for positional_encoding_fwd.1']
  #allocation3 [shape = 's32[1]{0:T(128)S(6)}', space=smem, size = 0x200, scoped, tag = 'prefetched SMEM operand 0']
  %s0 = inlined_call_operand.<no memory space> [shape: s32[1], index: 0, kind: input, shape index: {}]
  %s1 = inlined_call_operand.vmem [shape: f32[2,256], index: 1, kind: input, shape index: {}, may-alias: {1,3}]
  %s2 = inlined_call_operand.vmem [shape: f32[1,256], index: 2, kind: input, shape index: {}]
  %s3 = inlined_call_operand.vmem [shape: f32[2,256], index: 3, kind: output, shape index: {}, may-alias: {1,3}]
  %s4 = sld [smem:[#allocation0]]
  $region41: #{positional_encoding_fwd.1} parent=0
    _
  %s6 = ssub.s32 1, %s4
  %s7 = scalar_select 0, %s6, %s4
  %8 = sst [smem:[#allocation3]] %s0
  loop: start=0, step=1, limit=4
  $region2: #{positional_encoding_fwd.1} parent=0 // loop_pre_header
    _
  $region3: #{positional_encoding_fwd.1} parent=0 // loop_header
    %s10 = sphi 0, %s14
    %p11 = scmp.ge.s32.totalorder %s10, 4
    %s20 = sphi 0, %s22
    %s23 = sphi 0, %s20
    %s24 = sphi 0, %s23
    %s40 = sphi 0, %s24
    %s46 = sphi 0, %s48
    %s49 = sphi 0, %s46
    %s50 = sphi 0, %s49
    %s66 = sphi 0, %s50
    %s72 = sphi 0, %s74
    %s75 = sphi 0, %s72
    %s76 = sphi 0, %s75
    %s92 = sphi 0, %s76
  $region4: #{positional_encoding_fwd.1} parent=0 // loop_header_branch
    %13 = sbr.rel (%p11) target = $region8
  $region5: #{positional_encoding_fwd.1} parent=0 // loop_body
    %s15 = ssub.s32 %s10, 1
    %s16 = ssub.s32 %s10, 2
    %s17 = sadd.s32 %s10, 1
    %s18 = ssub.s32 %s10, %s17
    %p19 = scmp.eq.s32.totalorder %s18, 0
    %s21 = sadd.s32 %s20, 1
    %s22 = scalar_select %p19, %s20, %s21
    %p25 = pneg %p19
    %p26 = scmp.eq.s32.totalorder %s10, 1
    %p27 = por %p25, %p26
    %p28 = scmp.ne.s32.totalorder %s20, %s23
    %p29 = scmp.eq.s32.totalorder %s10, 0
    %p30 = por %p28, %p29
    %p31 = scmp.ne.s32.totalorder %s20, %s23
    %p32 = scmp.eq.s32.totalorder %s15, 1
    %p33 = por %p31, %p32
    %p34 = scmp.ne.s32.totalorder %s23, %s24
    %p35 = scmp.eq.s32.totalorder %s15, 0
    %p36 = por %p34, %p35
    %p37 = scmp.ne.s32.totalorder %s23, %s24
    %p38 = scmp.eq.s32.totalorder %s16, 1
    %p39 = por %p37, %p38
    %p41 = scmp.ne.s32.totalorder %s24, %s40
    %p42 = scmp.eq.s32.totalorder %s16, 0
    %p43 = por %p41, %p42
    %s44 = ssub.s32 %s10, %s17
    %p45 = scmp.eq.s32.totalorder %s44, 0
    %s47 = sadd.s32 %s46, 1
    %s48 = scalar_select %p45, %s46, %s47
    %p51 = pneg %p45
    %p52 = scmp.eq.s32.totalorder %s10, 1
    %p53 = por %p51, %p52
    %p54 = scmp.ne.s32.totalorder %s46, %s49
    %p55 = scmp.eq.s32.totalorder %s10, 0
    %p56 = por %p54, %p55
    %p57 = scmp.ne.s32.totalorder %s46, %s49
    %p58 = scmp.eq.s32.totalorder %s15, 1
    %p59 = por %p57, %p58
    %p60 = scmp.ne.s32.totalorder %s49, %s50
    %p61 = scmp.eq.s32.totalorder %s15, 0
    %p62 = por %p60, %p61
    %p63 = scmp.ne.s32.totalorder %s49, %s50
    %p64 = scmp.eq.s32.totalorder %s16, 1
    %p65 = por %p63, %p64
    %p67 = scmp.ne.s32.totalorder %s50, %s66
    %p68 = scmp.eq.s32.totalorder %s16, 0
    %p69 = por %p67, %p68
    %s70 = ssub.s32 %s10, %s17
    %p71 = scmp.eq.s32.totalorder %s70, 0
    %s73 = sadd.s32 %s72, 1
    %s74 = scalar_select %p71, %s72, %s73
    %p77 = pneg %p71
    %p78 = scmp.eq.s32.totalorder %s10, 1
    %p79 = por %p77, %p78
    %p80 = scmp.ne.s32.totalorder %s72, %s75
    %p81 = scmp.eq.s32.totalorder %s10, 0
    %p82 = por %p80, %p81
    %p83 = scmp.ne.s32.totalorder %s72, %s75
    %p84 = scmp.eq.s32.totalorder %s15, 1
    %p85 = por %p83, %p84
    %p86 = scmp.ne.s32.totalorder %s75, %s76
    %p87 = scmp.eq.s32.totalorder %s15, 0
    %p88 = por %p86, %p87
    %p89 = scmp.ne.s32.totalorder %s75, %s76
    %p90 = scmp.eq.s32.totalorder %s16, 1
    %p91 = por %p89, %p90
    %p93 = scmp.ne.s32.totalorder %s76, %s92
    %p94 = scmp.eq.s32.totalorder %s16, 0
    %p95 = por %p93, %p94
    %p96 = scmp.le.s32.totalorder 1, %s10
    %p97 = scmp.lt.s32.totalorder %s10, 3
    %p98 = pnand %p96, %p97
    %p99 = pneg %p98
    // Predicated region
    $region9: #{positional_encoding_fwd.1} parent=5 // pred_check
      _
    $region10: #{positional_encoding_fwd.1} parent=5 // pred_check_branch
      %101 = sbr.rel (%p98) target = $region12
    $region11: #{positional_encoding_fwd.1} parent=5 // pred_region
      %s102 = ssub.s32 %s10, 1
    $region12: #{positional_encoding_fwd.1} parent=5 // pred_fallthru
      _
    %p103 = scmp.lt.s32.totalorder %s10, 2
    // Predicated region
    $region13: #{positional_encoding_fwd.1} parent=5 // pred_check
      %p104 = pneg %p103
    $region14: #{positional_encoding_fwd.1} parent=5 // pred_check_branch
      %106 = sbr.rel (%p104) target = $region16
    $region15: #{positional_encoding_fwd.1} parent=5 // pred_region
      // Predicated region
      $region17: #{positional_encoding_fwd.1} parent=15 // pred_check
        %p107 = pneg %p30
      $region18: #{positional_encoding_fwd.1} parent=15 // pred_check_branch
        %109 = sbr.rel (%p107) target = $region20
      $region19: #{positional_encoding_fwd.1} parent=15 // pred_region
        %p110 = scmp.lt.s32.totalorder %s10, 1
        %s111 = scalar_select %p110, %s10, 1
        %s112 = smul.addr %s111, 2
        %s113 = scalar_lea.vmem %s1, %s112
      $region20: #{positional_encoding_fwd.1} parent=15 // pred_fallthru
        _
      // Predicated region
      $region21: #{positional_encoding_fwd.1} parent=15 // pred_check
        %p114 = pneg %p56
      $region22: #{positional_encoding_fwd.1} parent=15 // pred_check_branch
        %116 = sbr.rel (%p114) target = $region24
      $region23: #{positional_encoding_fwd.1} parent=15 // pred_region
        %p117 = scmp.lt.s32.totalorder %s10, 1
        %s118 = scalar_select %p117, %s10, 1
        %s119 = scalar_lea.vmem %s2, %s118
      $region24: #{positional_encoding_fwd.1} parent=15 // pred_fallthru
        _
    $region16: #{positional_encoding_fwd.1} parent=5 // pred_fallthru
      _
    %p120 = scmp.le.s32.totalorder 1, %s10
    %p121 = scmp.lt.s32.totalorder %s10, 3
    %p122 = pnand %p120, %p121
    %p123 = pneg %p122
    // Predicated region
    $region25: #{positional_encoding_fwd.1} parent=5 // pred_check
      _
    $region26: #{positional_encoding_fwd.1} parent=5 // pred_check_branch
      %125 = sbr.rel (%p122) target = $region28
    $region27: #{positional_encoding_fwd.1} parent=5 // pred_region
      %s126 = ssub.s32 %s10, 1
      %p127 = scmp.lt.s32.totalorder %s15, 1
      %s128 = scalar_select %p127, %s15, 1
      %s129 = smul.addr %s128, 2
      %s130 = scalar_lea.vmem %s1, %s129
      %p131 = pneg %p36
      %p132 = pneg %p33
      %p133 = scmp.lt.s32.totalorder %s15, 1
      %s134 = scalar_select %p133, %s15, 1
      %s135 = scalar_lea.vmem %s2, %s134
      %p136 = pneg %p62
      %p137 = pneg %p59
      %p138 = pneg %p88
      %p139 = pneg %p85
      %p140 = scmp.lt.s32.totalorder %s15, 1
      %s141 = scalar_select %p140, %s15, 1
      %s142 = smul.addr %s141, 2
      %s143 = scalar_lea.vmem %s3, %s142
      %p144 = scmp.lt.s32.totalorder %s15, 1
      %s145 = scalar_select %p144, %s15, 1
      %s146 = smul.addr %s145, 2
      %s147 = scalar_lea.vmem %s1, %s146
      %p148 = scmp.lt.s32.totalorder %s15, 1
      %s149 = scalar_select %p148, %s15, 1
      %s150 = scalar_lea.vmem %s2, %s149
      %p151 = scmp.lt.s32.totalorder %s15, 1
      %s152 = scalar_select %p151, %s15, 1
      %s153 = smul.addr %s152, 2
      %s154 = scalar_lea.vmem %s3, %s153
      %v155 = vld [vmem:[%s147] sm:$0x3]
      %v156 = vld [vmem:[%s150] sm:$0x1]
      %v158 = vlaneseq
      %v159 = vshrl.u32 %v158, 7
      %v160 = vsub.s32 0, %v159
      %v161 = vrot.slane %v156, %v160
      %v163 = vadd.f32 %v155, %v161
      %164 = vst [vmem:[%s154] sm:$0x3] %v163
      %p165 = scmp.lt.s32.totalorder %s15, 1
      %s166 = scalar_select %p165, %s15, 1
      %s167 = smul.addr %s166, 2
      %s168 = scalar_lea.vmem %s3, %s167
      // Predicated region
      $region29: #{positional_encoding_fwd.1} parent=27 // pred_check
        %p169 = pneg %p85
      $region30: #{positional_encoding_fwd.1} parent=27 // pred_check_branch
        %171 = sbr.rel (%p169) target = $region32
      $region31: #{positional_encoding_fwd.1} parent=27 // pred_region
        _
      $region32: #{positional_encoding_fwd.1} parent=27 // pred_fallthru
        _
    $region28: #{positional_encoding_fwd.1} parent=5 // pred_fallthru
      _
    %p172 = scmp.le.s32.totalorder 2, %s10
    // Predicated region
    $region33: #{positional_encoding_fwd.1} parent=5 // pred_check
      %p173 = pneg %p172
    $region34: #{positional_encoding_fwd.1} parent=5 // pred_check_branch
      %175 = sbr.rel (%p173) target = $region36
    $region35: #{positional_encoding_fwd.1} parent=5 // pred_region
      %s176 = ssub.s32 %s10, 2
      // Predicated region
      $region37: #{positional_encoding_fwd.1} parent=35 // pred_check
        %p177 = pneg %p91
      $region38: #{positional_encoding_fwd.1} parent=35 // pred_check_branch
        %179 = sbr.rel (%p177) target = $region40
      $region39: #{positional_encoding_fwd.1} parent=35 // pred_region
        %p180 = scmp.lt.s32.totalorder %s16, 1
        %s181 = scalar_select %p180, %s16, 1
        %s182 = smul.addr %s181, 2
        %s183 = scalar_lea.vmem %s3, %s182
      $region40: #{positional_encoding_fwd.1} parent=35 // pred_fallthru
        _
    $region36: #{positional_encoding_fwd.1} parent=5 // pred_fallthru
      _
  $region6: #{positional_encoding_fwd.1} parent=0 // loop_footer
    %s14 = sadd.s32 1, %s10
  $region7: #{positional_encoding_fwd.1} parent=0 // loop_footer_branch
    %9 = sbr.rel target = $region3
  $region8: #{positional_encoding_fwd.1} parent=0 // loop_exit
    _

</llo_original>
